<compile_context>
chip_gen: v7x
topology: tpu7x:2x2x1
jax: 0.10.0
libtpu: 0.0.40
codegen_flags: <defaults>
</compile_context>

<pallas_src>
import jax
import jax.numpy as jnp
from jax.experimental import pallas as pl
from jax.experimental.pallas import tpu as pltpu

BN_EPS = 1e-5

# dot_general dimension numbers for (F, K) @ (B, K)^T -> (F, B)  (rhs transposed;
# lets Mosaic pick the transposed-matmul path instead of an explicit XLU transpose).
_NT_DIMS = (((1,), (1,)), ((), ()))


# ---------------------------------------------------------------------------
# Kernel (transposed layout: features on sublanes, batch on lanes)
# ---------------------------------------------------------------------------
def _make_deeponet_kernel(mxu_dtype):
    def kernel(xf_ref, xl_ref, w0b_ref, w0t_ref, w1_ref,
               g0_ref, b0_ref, g1_ref, b1_ref, bias_ref, out_ref):
        batch = xf_ref.shape[0]                 # static
        inv_b = 1.0 / batch
        ones_col = jnp.ones((batch, 1), jnp.float32)

        def mm_nt(a, b):                        # (F,K) @ (B,K)^T -> (F,B), f32 acc
            return jax.lax.dot_general(a.astype(mxu_dtype), b.astype(mxu_dtype),
                                       _NT_DIMS, preferred_element_type=jnp.float32)

        def mm(a, b):                           # (F,K) @ (K,B) -> (F,B), f32 acc
            return jnp.dot(a.astype(mxu_dtype), b.astype(mxu_dtype),
                           preferred_element_type=jnp.float32)

        def bn(h, gamma, beta):
            # Training-mode BatchNorm over the batch (lane) axis.  Reductions
            # run on the MXU ((F,B)@(B,1), contracting the lane axis -> no
            # transpose).  Two-pass (centered) variance for f32 stability.
            mean = jnp.dot(h, ones_col, preferred_element_type=jnp.float32) * inv_b
            hc = h - mean                                            # (F, B)
            var = jnp.dot(hc * hc, ones_col,
                          preferred_element_type=jnp.float32) * inv_b
            scale = gamma * jax.lax.rsqrt(var + BN_EPS)              # (F, 1)
            return hc * scale + beta                                 # one FMA

        # ---- Layer 0: Linear -> BN -> ReLU, branch & trunk fused on sublanes.
        hb = mm_nt(w0b_ref[...], xf_ref[...])            # (32, B)
        ht = mm_nt(w0t_ref[...], xl_ref[...])            # (32, B)
        h = jnp.concatenate([hb, ht], axis=0)            # (64, B), sublane-aligned
        h = jnp.maximum(bn(h, g0_ref[...], b0_ref[...]), 0.0)

        # ---- Layer 1: block-diagonal Linear(64 -> 64) -> BN  (K = 64).
        h = mm(w1_ref[...], h)                            # (64, B)
        h = bn(h, g1_ref[...], b1_ref[...])

        # ---- Split at sublane 32 (tile aligned, free), ReLU on trunk half,
        #      row-wise dot as a lane-dense (1, B) MXU contraction (kept f32:
        #      it is the final accumulation and costs ~nothing at K = 32).
        p = h.shape[0] // 2
        prod = h[:p, :] * jnp.maximum(h[p:, :], 0.0)      # (32, B), pure VPU
        ones_row = jnp.ones((1, p), jnp.float32)
        s = jnp.dot(ones_row, prod, preferred_element_type=jnp.float32)   # (1, B)
        out_ref[...] = s + bias_ref[0, 0]                 # scalar bias from SMEM

    return kernel


# ---------------------------------------------------------------------------
# Parameter construction / packing
# ---------------------------------------------------------------------------
def make_fnn_params(key, layer_sizes):
    """He-normal weights in PyTorch (out, in) orientation, identity BN affine.

    Linear biases are omitted: zero-initialized in the reference AND exactly
    cancelled by training-mode BatchNorm's mean subtraction.
    """
    params = []
    for i in range(len(layer_sizes) - 1):
        fan_in, fan_out = layer_sizes[i], layer_sizes[i + 1]
        key, wk = jax.random.split(key)
        w = jax.random.normal(wk, (fan_out, fan_in), jnp.float32) * jnp.sqrt(2.0 / fan_in)
        gamma = jnp.ones((fan_out,), jnp.float32)
        beta = jnp.zeros((fan_out,), jnp.float32)
        params.append((w, gamma, beta))
    return key, params


def pack_fused_params(branch_params, trunk_params, mxu_dtype=jnp.float32):
    """Pack branch+trunk params for the transposed-layout kernel (exact fusion).

    Layer-0 weights stay separate (no input concat needed); layer-1 weights are
    packed block-diagonally so one K=64 matmul serves both FNNs.  BN params are
    fused into (64, 1) columns (sublane-indexed, lane-broadcast).
    Set mxu_dtype=jnp.bfloat16 on v6e/v7x for large-batch runs.
    """
    (bw0, bg0, bb0), (bw1, bg1, bb1) = branch_params
    (tw0, tg0, tb0), (tw1, tg1, tb1) = trunk_params
    p = bw0.shape[0]
    assert tw0.shape[0] == p and bw1.shape == (p, p) and tw1.shape == (p, p)

    w1 = jnp.zeros((2 * p, 2 * p), jnp.float32)
    w1 = w1.at[:p, :p].set(bw1)
    w1 = w1.at[p:, p:].set(tw1)

    def col(a, b):
        return jnp.concatenate([a, b]).reshape(2 * p, 1)

    return (bw0.astype(mxu_dtype), tw0.astype(mxu_dtype), w1.astype(mxu_dtype),
            col(bg0, tg0), col(bb0, tb0), col(bg1, tg1), col(bb1, tb1))


# ---------------------------------------------------------------------------
# Wrapper
# ---------------------------------------------------------------------------
def deeponet_forward(x_func, x_loc, fused_params, bias, mxu_dtype=jnp.float32):
    w0b, w0t, w1, g0, b0, g1, b1 = fused_params
    batch = x_func.shape[0]

    vmem = pl.BlockSpec(memory_space=pltpu.MemorySpace.VMEM)
    smem = pl.BlockSpec(memory_space=pltpu.MemorySpace.SMEM)
    out_row = pl.pallas_call(
        _make_deeponet_kernel(mxu_dtype),
        out_shape=jax.ShapeDtypeStruct((1, batch), jnp.float32),   # lane-dense
        in_specs=[vmem] * 9 + [smem],
        out_specs=vmem,
    )(x_func, x_loc, w0b, w0t, w1, g0, b0, g1, b1, bias)
    # Module semantics are (B, 1); large-B consumers should keep the lane-dense
    # (1, B) row and skip this reshape.
    return out_row.reshape(batch, 1)


# ---------------------------------------------------------------------------
# Pure-JAX reference of the original (unfused) module, for a sanity check
# ---------------------------------------------------------------------------
def _reference_forward(x_func, x_loc, branch_params, trunk_params, bias):
    def fnn(x, params):
        n = len(params)
        for i, (w, g, bt) in enumerate(params):
            h = x @ w.T                                   # Linear bias is zero
            mean = jnp.mean(h, axis=0, keepdims=True)
            var = jnp.mean((h - mean) ** 2, axis=0, keepdims=True)
            h = (h - mean) / jnp.sqrt(var + BN_EPS) * g + bt
            if i < n - 1:
                h = jnp.maximum(h, 0.0)
            x = h
        return x

    hf = fnn(x_func, branch_params)
    hl = jnp.maximum(fnn(x_loc, trunk_params), 0.0)
    return jnp.sum(hf * hl, axis=-1, keepdims=True) + bias[0, 0]


if __name__ == "__main__":
    # Shapes implied by the module: layer_sizes_branch=[16,32,32], trunk=[8,32,32]
    B = 8
    layer_sizes_branch = [16, 32, 32]
    layer_sizes_trunk = [8, 32, 32]

    key = jax.random.PRNGKey(0)
    key, kf, kl = jax.random.split(key, 3)
    x_func = jax.random.normal(kf, (B, layer_sizes_branch[0]), jnp.float32)
    x_loc = jax.random.normal(kl, (B, layer_sizes_trunk[0]), jnp.float32)

    key, branch_params = make_fnn_params(key, layer_sizes_branch)
    key, trunk_params = make_fnn_params(key, layer_sizes_trunk)
    bias = jnp.zeros((1, 1), jnp.float32)          # self.b = Parameter(tensor(0.0))

    fused_params = pack_fused_params(branch_params, trunk_params)

    out = deeponet_forward(x_func, x_loc, fused_params, bias)
    jax.block_until_ready(out)
    assert out.shape == (B, 1) and out.dtype == jnp.float32

    ref = _reference_forward(x_func, x_loc, branch_params, trunk_params, bias)
    assert jnp.allclose(out, ref, rtol=1e-2, atol=1e-2)

    print("KERNEL_OK")
</pallas_src>

<mosaic_0001>
module attributes {stable_mosaic.version = 11 : i64} {
  func.func @kernel(%arg0: memref<8x16xf32, #tpu.memory_space<vmem>>, %arg1: memref<8x8xf32, #tpu.memory_space<vmem>>, %arg2: memref<32x16xf32, #tpu.memory_space<vmem>>, %arg3: memref<32x8xf32, #tpu.memory_space<vmem>>, %arg4: memref<64x64xf32, #tpu.memory_space<vmem>>, %arg5: memref<64x1xf32, #tpu.memory_space<vmem>>, %arg6: memref<64x1xf32, #tpu.memory_space<vmem>>, %arg7: memref<64x1xf32, #tpu.memory_space<vmem>>, %arg8: memref<64x1xf32, #tpu.memory_space<vmem>>, %arg9: memref<1x1xf32, #tpu.memory_space<smem>>, %arg10: memref<1x8xf32, #tpu.memory_space<vmem>>) attributes {dimension_semantics = [], scalar_prefetch = 0 : i64, scratch_operands = 0 : i64, tpu.core_type = #tpu.core_type<tc>} {
    %cst = arith.constant 1.000000e+00 : f32
    %0 = vector.broadcast %cst : f32 to vector<8x1xf32>
    %c0 = arith.constant 0 : index
    %c0_0 = arith.constant 0 : index
    %1 = vector.load %arg2[%c0, %c0_0] : memref<32x16xf32, #tpu.memory_space<vmem>>, vector<32x16xf32>
    %c0_1 = arith.constant 0 : index
    %c0_2 = arith.constant 0 : index
    %2 = vector.load %arg0[%c0_1, %c0_2] : memref<8x16xf32, #tpu.memory_space<vmem>>, vector<8x16xf32>
    %cst_3 = arith.constant dense<0.000000e+00> : vector<32x8xf32>
    %3 = tpu.matmul %1, %2, %cst_3 {dimension_numbers = #tpu.dot_dimension_numbers<[1], [1], [0], [0], [0, 0, 1, 0], [], []>} : vector<32x16xf32>, vector<8x16xf32>, vector<32x8xf32> -> vector<32x8xf32>
    %c0_4 = arith.constant 0 : index
    %c0_5 = arith.constant 0 : index
    %4 = vector.load %arg3[%c0_4, %c0_5] : memref<32x8xf32, #tpu.memory_space<vmem>>, vector<32x8xf32>
    %c0_6 = arith.constant 0 : index
    %c0_7 = arith.constant 0 : index
    %5 = vector.load %arg1[%c0_6, %c0_7] : memref<8x8xf32, #tpu.memory_space<vmem>>, vector<8x8xf32>
    %cst_8 = arith.constant dense<0.000000e+00> : vector<32x8xf32>
    %6 = tpu.matmul %4, %5, %cst_8 {dimension_numbers = #tpu.dot_dimension_numbers<[1], [1], [0], [0], [0, 0, 1, 0], [], []>} : vector<32x8xf32>, vector<8x8xf32>, vector<32x8xf32> -> vector<32x8xf32>
    %7 = tpu.concatenate %3, %6 in 0 : vector<32x8xf32>, vector<32x8xf32> -> vector<64x8xf32>
    %c0_9 = arith.constant 0 : index
    %c0_10 = arith.constant 0 : index
    %8 = vector.load %arg5[%c0_9, %c0_10] : memref<64x1xf32, #tpu.memory_space<vmem>>, vector<64x1xf32>
    %c0_11 = arith.constant 0 : index
    %c0_12 = arith.constant 0 : index
    %9 = vector.load %arg6[%c0_11, %c0_12] : memref<64x1xf32, #tpu.memory_space<vmem>>, vector<64x1xf32>
    %cst_13 = arith.constant dense<0.000000e+00> : vector<64x1xf32>
    %10 = tpu.matmul %7, %0, %cst_13 {dimension_numbers = #tpu.dot_dimension_numbers<[1], [0], [0], [1], [0, 0, 1, 1], [], []>} : vector<64x8xf32>, vector<8x1xf32>, vector<64x1xf32> -> vector<64x1xf32>
    %cst_14 = arith.constant 1.250000e-01 : f32
    %11 = vector.broadcast %cst_14 : f32 to vector<64x1xf32>
    %12 = arith.mulf %10, %11 : vector<64x1xf32>
    %13 = vector.broadcast %12 : vector<64x1xf32> to vector<64x8xf32>
    %14 = arith.subf %7, %13 : vector<64x8xf32>
    %15 = arith.mulf %14, %14 : vector<64x8xf32>
    %cst_15 = arith.constant dense<0.000000e+00> : vector<64x1xf32>
    %16 = tpu.matmul %15, %0, %cst_15 {dimension_numbers = #tpu.dot_dimension_numbers<[1], [0], [0], [1], [0, 0, 1, 1], [], []>} : vector<64x8xf32>, vector<8x1xf32>, vector<64x1xf32> -> vector<64x1xf32>
    %cst_16 = arith.constant 1.250000e-01 : f32
    %17 = vector.broadcast %cst_16 : f32 to vector<64x1xf32>
    %18 = arith.mulf %16, %17 : vector<64x1xf32>
    %cst_17 = arith.constant 9.99999974E-6 : f32
    %19 = vector.broadcast %cst_17 : f32 to vector<64x1xf32>
    %20 = arith.addf %18, %19 : vector<64x1xf32>
    %21 = math.rsqrt %20 : vector<64x1xf32>
    %22 = arith.mulf %8, %21 : vector<64x1xf32>
    %23 = vector.broadcast %22 : vector<64x1xf32> to vector<64x8xf32>
    %24 = arith.mulf %14, %23 : vector<64x8xf32>
    %25 = vector.broadcast %9 : vector<64x1xf32> to vector<64x8xf32>
    %26 = arith.addf %24, %25 : vector<64x8xf32>
    %cst_18 = arith.constant 0.000000e+00 : f32
    %27 = vector.broadcast %cst_18 : f32 to vector<64x8xf32>
    %28 = arith.maximumf %26, %27 : vector<64x8xf32>
    %c0_19 = arith.constant 0 : index
    %c0_20 = arith.constant 0 : index
    %29 = vector.load %arg4[%c0_19, %c0_20] : memref<64x64xf32, #tpu.memory_space<vmem>>, vector<64x64xf32>
    %cst_21 = arith.constant dense<0.000000e+00> : vector<64x8xf32>
    %30 = tpu.matmul %29, %28, %cst_21 {dimension_numbers = #tpu.dot_dimension_numbers<[1], [0], [0], [1], [0, 0, 1, 1], [], []>} : vector<64x64xf32>, vector<64x8xf32>, vector<64x8xf32> -> vector<64x8xf32>
    %c0_22 = arith.constant 0 : index
    %c0_23 = arith.constant 0 : index
    %31 = vector.load %arg7[%c0_22, %c0_23] : memref<64x1xf32, #tpu.memory_space<vmem>>, vector<64x1xf32>
    %c0_24 = arith.constant 0 : index
    %c0_25 = arith.constant 0 : index
    %32 = vector.load %arg8[%c0_24, %c0_25] : memref<64x1xf32, #tpu.memory_space<vmem>>, vector<64x1xf32>
    %cst_26 = arith.constant dense<0.000000e+00> : vector<64x1xf32>
    %33 = tpu.matmul %30, %0, %cst_26 {dimension_numbers = #tpu.dot_dimension_numbers<[1], [0], [0], [1], [0, 0, 1, 1], [], []>} : vector<64x8xf32>, vector<8x1xf32>, vector<64x1xf32> -> vector<64x1xf32>
    %cst_27 = arith.constant 1.250000e-01 : f32
    %34 = vector.broadcast %cst_27 : f32 to vector<64x1xf32>
    %35 = arith.mulf %33, %34 : vector<64x1xf32>
    %36 = vector.broadcast %35 : vector<64x1xf32> to vector<64x8xf32>
    %37 = arith.subf %30, %36 : vector<64x8xf32>
    %38 = arith.mulf %37, %37 : vector<64x8xf32>
    %cst_28 = arith.constant dense<0.000000e+00> : vector<64x1xf32>
    %39 = tpu.matmul %38, %0, %cst_28 {dimension_numbers = #tpu.dot_dimension_numbers<[1], [0], [0], [1], [0, 0, 1, 1], [], []>} : vector<64x8xf32>, vector<8x1xf32>, vector<64x1xf32> -> vector<64x1xf32>
    %cst_29 = arith.constant 1.250000e-01 : f32
    %40 = vector.broadcast %cst_29 : f32 to vector<64x1xf32>
    %41 = arith.mulf %39, %40 : vector<64x1xf32>
    %cst_30 = arith.constant 9.99999974E-6 : f32
    %42 = vector.broadcast %cst_30 : f32 to vector<64x1xf32>
    %43 = arith.addf %41, %42 : vector<64x1xf32>
    %44 = math.rsqrt %43 : vector<64x1xf32>
    %45 = arith.mulf %31, %44 : vector<64x1xf32>
    %46 = vector.broadcast %45 : vector<64x1xf32> to vector<64x8xf32>
    %47 = arith.mulf %37, %46 : vector<64x8xf32>
    %48 = vector.broadcast %32 : vector<64x1xf32> to vector<64x8xf32>
    %49 = arith.addf %47, %48 : vector<64x8xf32>
    %50 = vector.extract_strided_slice %49 {offsets = [0, 0], sizes = [32, 8], strides = [1, 1]} : vector<64x8xf32> to vector<32x8xf32>
    %51 = vector.extract_strided_slice %49 {offsets = [32, 0], sizes = [32, 8], strides = [1, 1]} : vector<64x8xf32> to vector<32x8xf32>
    %cst_31 = arith.constant 0.000000e+00 : f32
    %52 = vector.broadcast %cst_31 : f32 to vector<32x8xf32>
    %53 = arith.maximumf %51, %52 : vector<32x8xf32>
    %54 = arith.mulf %50, %53 : vector<32x8xf32>
    %cst_32 = arith.constant 1.000000e+00 : f32
    %55 = vector.broadcast %cst_32 : f32 to vector<1x32xf32>
    %cst_33 = arith.constant dense<0.000000e+00> : vector<1x8xf32>
    %56 = tpu.matmul %55, %54, %cst_33 {dimension_numbers = #tpu.dot_dimension_numbers<[1], [0], [0], [1], [0, 0, 1, 1], [], []>} : vector<1x32xf32>, vector<32x8xf32>, vector<1x8xf32> -> vector<1x8xf32>
    %c0_34 = arith.constant 0 : index
    %c0_35 = arith.constant 0 : index
    %57 = memref.load %arg9[%c0_34, %c0_35] : memref<1x1xf32, #tpu.memory_space<smem>>
    %58 = vector.broadcast %57 : f32 to vector<1x8xf32>
    %59 = arith.addf %56, %58 : vector<1x8xf32>
    %c0_36 = arith.constant 0 : index
    %c0_37 = arith.constant 0 : index
    %60 = vector.load %arg10[%c0_36, %c0_37] : memref<1x8xf32, #tpu.memory_space<vmem>>, vector<1x8xf32>
    tpu.vector_store %arg10[%c0_36, %c0_37], %59 {strides = array<i32>} : memref<1x8xf32, #tpu.memory_space<vmem>>, vector<1x8xf32>,
    return
  }
}

</mosaic_0001>

<llo_original>
// kernel: tpu_custom_call.1
$region0: #{tpu_custom_call.1}
  #allocation0 [shape = 'u32[]', space=smem, size = 0x4, offset = 0x4, fixed_abs, tag = 'smem constant byte address 0x4 - core index']
  #allocation1 [shape = 'u32[144,128]{1,0:T(1,128)}', space=vmem, size = 0x12000, scoped, tag = 'internal scratch']
  #allocation2 [shape = 'f32[1,1]{1,0:T(1,128)S(6)}', space=smem, size = 0x200, scoped, tag = 'scoped memory for tpu_custom_call.1']
  %s0 = inlined_call_operand.vmem [shape: f32[8,16], index: 0, kind: input, shape index: {}]
  %s1 = inlined_call_operand.vmem [shape: f32[8,8], index: 1, kind: input, shape index: {}]
  %s2 = inlined_call_operand.vmem [shape: f32[32,16], index: 2, kind: input, shape index: {}]
  %s3 = inlined_call_operand.vmem [shape: f32[32,8], index: 3, kind: input, shape index: {}]
  %s4 = inlined_call_operand.vmem [shape: f32[64,64], index: 4, kind: input, shape index: {}]
  %s5 = inlined_call_operand.vmem [shape: f32[64,1], index: 5, kind: input, shape index: {}]
  %s6 = inlined_call_operand.vmem [shape: f32[64,1], index: 6, kind: input, shape index: {}]
  %s7 = inlined_call_operand.vmem [shape: f32[64,1], index: 7, kind: input, shape index: {}]
  %s8 = inlined_call_operand.vmem [shape: f32[64,1], index: 8, kind: input, shape index: {}]
  %s9 = inlined_call_operand.<no memory space> [shape: f32[1,1], index: 9, kind: input, shape index: {}]
  %s10 = inlined_call_operand.hbm [shape: f32[1,8], index: 10, kind: output, shape index: {}]
  %s11 = sld [smem:[#allocation0]]
  $region50: #{tpu_custom_call.1} parent=0
    _
  %s13 = ssub.s32 1, %s11
  %s14 = scalar_select 0, %s13, %s11
  %15 = sst [smem:[#allocation2]] %s9
  $region1: #{tpu_custom_call.1} parent=0
    #allocation3 [shape = 'u8[512]{0}', space=vmem, size = 0x400, scoped, tag = 'output window, operand 0, single buffered']
    #allocation4 [shape = 's32[1]{0}', space=sflag, size = 0x4, scoped, tag = 'scoped memory for tpu_custom_call.1']
    %16 = vsyncpa [#allocation4], 0
    // Predicated region
    $region2: #{tpu_custom_call.1} parent=1 // pred_check
      _
    $region3: #{tpu_custom_call.1} parent=1 // pred_check_branch
      %18 = sbr.rel (0) target = $region5
    $region4: #{tpu_custom_call.1} parent=1 // pred_region
      _
    $region5: #{tpu_custom_call.1} parent=1 // pred_fallthru
      _
    // Predicated region
    $region6: #{tpu_custom_call.1} parent=1 // pred_check
      _
    $region7: #{tpu_custom_call.1} parent=1 // pred_check_branch
      %20 = sbr.rel (0) target = $region9
    $region8: #{tpu_custom_call.1} parent=1 // pred_region
      _
    $region9: #{tpu_custom_call.1} parent=1 // pred_fallthru
      _
    // Predicated region
    $region10: #{tpu_custom_call.1} parent=1 // pred_check
      _
    $region11: #{tpu_custom_call.1} parent=1 // pred_check_branch
      %22 = sbr.rel (0) target = $region13
    $region12: #{tpu_custom_call.1} parent=1 // pred_region
      _
    $region13: #{tpu_custom_call.1} parent=1 // pred_fallthru
      _
    // Predicated region
    $region14: #{tpu_custom_call.1} parent=1 // pred_check
      _
    $region15: #{tpu_custom_call.1} parent=1 // pred_check_branch
      %24 = sbr.rel (0) target = $region17
    $region16: #{tpu_custom_call.1} parent=1 // pred_region
      _
    $region17: #{tpu_custom_call.1} parent=1 // pred_fallthru
      _
    // Predicated region
    $region18: #{tpu_custom_call.1} parent=1 // pred_check
      _
    $region19: #{tpu_custom_call.1} parent=1 // pred_check_branch
      %26 = sbr.rel (0) target = $region21
    $region20: #{tpu_custom_call.1} parent=1 // pred_region
      _
    $region21: #{tpu_custom_call.1} parent=1 // pred_fallthru
      _
    // Predicated region
    $region22: #{tpu_custom_call.1} parent=1 // pred_check
      _
    $region23: #{tpu_custom_call.1} parent=1 // pred_check_branch
      %28 = sbr.rel (0) target = $region25
    $region24: #{tpu_custom_call.1} parent=1 // pred_region
      _
    $region25: #{tpu_custom_call.1} parent=1 // pred_fallthru
      _
    // Predicated region
    $region26: #{tpu_custom_call.1} parent=1 // pred_check
      _
    $region27: #{tpu_custom_call.1} parent=1 // pred_check_branch
      %30 = sbr.rel (0) target = $region29
    $region28: #{tpu_custom_call.1} parent=1 // pred_region
      _
    $region29: #{tpu_custom_call.1} parent=1 // pred_fallthru
      _
    // Predicated region
    $region30: #{tpu_custom_call.1} parent=1 // pred_check
      _
    $region31: #{tpu_custom_call.1} parent=1 // pred_check_branch
      %32 = sbr.rel (0) target = $region33
    $region32: #{tpu_custom_call.1} parent=1 // pred_region
      _
    $region33: #{tpu_custom_call.1} parent=1 // pred_fallthru
      _
    // Predicated region
    $region34: #{tpu_custom_call.1} parent=1 // pred_check
      _
    $region35: #{tpu_custom_call.1} parent=1 // pred_check_branch
      %34 = sbr.rel (0) target = $region37
    $region36: #{tpu_custom_call.1} parent=1 // pred_region
      _
    $region37: #{tpu_custom_call.1} parent=1 // pred_fallthru
      _
    // Predicated region
    $region38: #{tpu_custom_call.1} parent=1 // pred_check
      _
    $region39: #{tpu_custom_call.1} parent=1 // pred_check_branch
      %36 = sbr.rel (0) target = $region41
    $region40: #{tpu_custom_call.1} parent=1 // pred_region
      _
    $region41: #{tpu_custom_call.1} parent=1 // pred_fallthru
      _
    %v37 = vld [vmem:[%s2] sm:$0xff]
    %v38 = vld [vmem:[%s2 + $0x8] sm:$0xff]
    %v39 = vld [vmem:[%s2 + $0x10] sm:$0xff]
    %v40 = vld [vmem:[%s2 + $0x18] sm:$0xff]
    %v41 = vld [vmem:[%s0] sm:$0xff]
    %vm42 = vcmask 130048
    %v44 = vsel %vm42, %v37, 0
    %v47 = vsel %vm42, %v38, 0
    %v50 = vsel %vm42, %v39, 0
    %v53 = vsel %vm42, %v40, 0
    %v56 = vsel %vm42, %v41, 0
    %58 = vmatprep.subr.mxu0 0.0
    %59 = vmatpush1.xpose.msra.mxu0 %v56
    %60 = vmatprep.subr.mxu0 0.0
    %61 = vmatpush1.xpose.msra.mxu0 0.0
    %62 = vmatprep.subr.mxu0 0.0
    %63 = vmatpush1.xpose.msra.mxu0 0.0
    %64 = vmatprep.subr.mxu0 0.0
    %65 = vmatpush1.xpose.msra.mxu0 0.0
    %66 = vmatprep.subr.mxu0 0.0
    %67 = vmatpush1.xpose.msra.mxu0 0.0
    %68 = vmatprep.subr.mxu0 0.0
    %69 = vmatpush1.xpose.msra.mxu0 0.0
    %70 = vmatprep.subr.mxu0 0.0
    %71 = vmatpush1.xpose.msra.mxu0 0.0
    %72 = vmatprep.subr.mxu0 0.0
    %73 = vmatpush1.xpose.msra.mxu0 0.0
    %74 = vmatprep.subr.mxu0 0.0
    %75 = vmatpush1.xpose.msra.mxu0 0.0
    %76 = vmatprep.subr.mxu0 0.0
    %77 = vmatpush1.xpose.msra.mxu0 0.0
    %78 = vmatprep.subr.mxu0 0.0
    %79 = vmatpush1.xpose.msra.mxu0 0.0
    %80 = vmatprep.subr.mxu0 0.0
    %81 = vmatpush1.xpose.msra.mxu0 0.0
    %82 = vmatprep.subr.mxu0 0.0
    %83 = vmatpush1.xpose.msra.mxu0 0.0
    %84 = vmatprep.subr.mxu0 0.0
    %85 = vmatpush1.xpose.msra.mxu0 0.0
    %86 = vmatprep.subr.mxu0 0.0
    %87 = vmatpush1.xpose.msra.mxu0 0.0
    %88 = vmatprep.subr.mxu0 0.0
    %89 = vmatpush1.xpose.msra.mxu0 0.0
    %90 = vmatprep.subr.mxu0 0.0
    %91 = vmatpush1.xpose.msra.mxu0 0.0
    %92 = vmatprep.subr.mxu0 0.0
    %93 = vmatpush1.xpose.msra.mxu0 0.0
    %94 = vmatprep.subr.mxu0 0.0
    %95 = vmatpush1.xpose.msra.mxu0 0.0
    %96 = vmatprep.subr.mxu0 0.0
    %97 = vmatpush1.xpose.msra.mxu0 0.0
    %98 = vmatprep.subr.mxu0 0.0
    %99 = vmatpush1.xpose.msra.mxu0 0.0
    %100 = vmatprep.subr.mxu0 0.0
    %101 = vmatpush1.xpose.msra.mxu0 0.0
    %102 = vmatprep.subr.mxu0 0.0
    %103 = vmatpush1.xpose.msra.mxu0 0.0
    %104 = vmatprep.subr.mxu0 0.0
    %105 = vmatpush1.xpose.msra.mxu0 0.0
    %106 = vmatprep.subr.mxu0 0.0
    %107 = vmatpush1.xpose.msra.mxu0 0.0
    %108 = vmatprep.subr.mxu0 0.0
    %109 = vmatpush1.xpose.msra.mxu0 0.0
    %110 = vmatprep.subr.mxu0 0.0
    %111 = vmatpush1.xpose.msra.mxu0 0.0
    %112 = vmatprep.subr.mxu0 0.0
    %113 = vmatpush1.xpose.msra.mxu0 0.0
    %114 = vmatprep.subr.mxu0 0.0
    %115 = vmatpush1.xpose.msra.mxu0 0.0
    %116 = vmatprep.subr.mxu0 0.0
    %117 = vmatpush1.xpose.msra.mxu0 0.0
    %118 = vmatprep.subr.mxu0 0.0
    %119 = vmatpush1.xpose.msra.mxu0 0.0
    %120 = vmatprep.subr.mxu0 0.0
    %121 = vmatpush1.xpose.msra.mxu0 0.0
    %122 = vmatprep.mubr.f32.mxu0 0.0
    %123 = vmatmul.mubr.f32.gmra.mrb[0].mxu0 %v44
    %v124 = vpop.f32.mrb[0].mxu0
    %v125 = vadd.f32 0.0, %v124
    %v126 = vpop.f32.mrb[0].mxu0
    %127 = vmatprep.mubr.f32.mxu0 0.0
    %128 = vmatmul.mubr.f32.gmra.mrb[0].mxu0 %v47
    %v129 = vpop.f32.mrb[0].mxu0
    %v130 = vadd.f32 0.0, %v129
    %v131 = vpop.f32.mrb[0].mxu0
    %132 = vmatprep.mubr.f32.mxu0 0.0
    %133 = vmatmul.mubr.f32.gmra.mrb[0].mxu0 %v50
    %v134 = vpop.f32.mrb[0].mxu0
    %v135 = vadd.f32 0.0, %v134
    %v136 = vpop.f32.mrb[0].mxu0
    %137 = vmatprep.mubr.f32.mxu0 0.0
    %138 = vmatmul.mubr.f32.gmra.mrb[0].mxu0 %v53
    %v139 = vpop.f32.mrb[0].mxu0
    %v140 = vadd.f32 0.0, %v139
    %v141 = vpop.f32.mrb[0].mxu0
    %142 = vdwg.mxu0
    %v143 = vld [vmem:[%s3] sm:$0xff]
    %v144 = vld [vmem:[%s3 + $0x8] sm:$0xff]
    %v145 = vld [vmem:[%s3 + $0x10] sm:$0xff]
    %v146 = vld [vmem:[%s3 + $0x18] sm:$0xff]
    %v147 = vld [vmem:[%s1] sm:$0xff]
    %vm148 = vcmask 64512
    %v150 = vsel %vm148, %v143, 0
    %v153 = vsel %vm148, %v144, 0
    %v156 = vsel %vm148, %v145, 0
    %v159 = vsel %vm148, %v146, 0
    %v162 = vsel %vm148, %v147, 0
    %164 = vmatprep.subr.mxu0 0.0
    %165 = vmatpush1.xpose.msra.mxu0 %v162
    %166 = vmatprep.subr.mxu0 0.0
    %167 = vmatpush1.xpose.msra.mxu0 0.0
    %168 = vmatprep.subr.mxu0 0.0
    %169 = vmatpush1.xpose.msra.mxu0 0.0
    %170 = vmatprep.subr.mxu0 0.0
    %171 = vmatpush1.xpose.msra.mxu0 0.0
    %172 = vmatprep.subr.mxu0 0.0
    %173 = vmatpush1.xpose.msra.mxu0 0.0
    %174 = vmatprep.subr.mxu0 0.0
    %175 = vmatpush1.xpose.msra.mxu0 0.0
    %176 = vmatprep.subr.mxu0 0.0
    %177 = vmatpush1.xpose.msra.mxu0 0.0
    %178 = vmatprep.subr.mxu0 0.0
    %179 = vmatpush1.xpose.msra.mxu0 0.0
    %180 = vmatprep.subr.mxu0 0.0
    %181 = vmatpush1.xpose.msra.mxu0 0.0
    %182 = vmatprep.subr.mxu0 0.0
    %183 = vmatpush1.xpose.msra.mxu0 0.0
    %184 = vmatprep.subr.mxu0 0.0
    %185 = vmatpush1.xpose.msra.mxu0 0.0
    %186 = vmatprep.subr.mxu0 0.0
    %187 = vmatpush1.xpose.msra.mxu0 0.0
    %188 = vmatprep.subr.mxu0 0.0
    %189 = vmatpush1.xpose.msra.mxu0 0.0
    %190 = vmatprep.subr.mxu0 0.0
    %191 = vmatpush1.xpose.msra.mxu0 0.0
    %192 = vmatprep.subr.mxu0 0.0
    %193 = vmatpush1.xpose.msra.mxu0 0.0
    %194 = vmatprep.subr.mxu0 0.0
    %195 = vmatpush1.xpose.msra.mxu0 0.0
    %196 = vmatprep.subr.mxu0 0.0
    %197 = vmatpush1.xpose.msra.mxu0 0.0
    %198 = vmatprep.subr.mxu0 0.0
    %199 = vmatpush1.xpose.msra.mxu0 0.0
    %200 = vmatprep.subr.mxu0 0.0
    %201 = vmatpush1.xpose.msra.mxu0 0.0
    %202 = vmatprep.subr.mxu0 0.0
    %203 = vmatpush1.xpose.msra.mxu0 0.0
    %204 = vmatprep.subr.mxu0 0.0
    %205 = vmatpush1.xpose.msra.mxu0 0.0
    %206 = vmatprep.subr.mxu0 0.0
    %207 = vmatpush1.xpose.msra.mxu0 0.0
    %208 = vmatprep.subr.mxu0 0.0
    %209 = vmatpush1.xpose.msra.mxu0 0.0
    %210 = vmatprep.subr.mxu0 0.0
    %211 = vmatpush1.xpose.msra.mxu0 0.0
    %212 = vmatprep.subr.mxu0 0.0
    %213 = vmatpush1.xpose.msra.mxu0 0.0
    %214 = vmatprep.subr.mxu0 0.0
    %215 = vmatpush1.xpose.msra.mxu0 0.0
    %216 = vmatprep.subr.mxu0 0.0
    %217 = vmatpush1.xpose.msra.mxu0 0.0
    %218 = vmatprep.subr.mxu0 0.0
    %219 = vmatpush1.xpose.msra.mxu0 0.0
    %220 = vmatprep.subr.mxu0 0.0
    %221 = vmatpush1.xpose.msra.mxu0 0.0
    %222 = vmatprep.subr.mxu0 0.0
    %223 = vmatpush1.xpose.msra.mxu0 0.0
    %224 = vmatprep.subr.mxu0 0.0
    %225 = vmatpush1.xpose.msra.mxu0 0.0
    %226 = vmatprep.subr.mxu0 0.0
    %227 = vmatpush1.xpose.msra.mxu0 0.0
    %228 = vmatprep.mubr.f32.mxu0 0.0
    %229 = vmatmul.mubr.f32.gmra.mrb[0].mxu0 %v150
    %v230 = vpop.f32.mrb[0].mxu0
    %v231 = vadd.f32 0.0, %v230
    %v232 = vpop.f32.mrb[0].mxu0
    %233 = vmatprep.mubr.f32.mxu0 0.0
    %234 = vmatmul.mubr.f32.gmra.mrb[0].mxu0 %v153
    %v235 = vpop.f32.mrb[0].mxu0
    %v236 = vadd.f32 0.0, %v235
    %v237 = vpop.f32.mrb[0].mxu0
    %238 = vmatprep.mubr.f32.mxu0 0.0
    %239 = vmatmul.mubr.f32.gmra.mrb[0].mxu0 %v156
    %v240 = vpop.f32.mrb[0].mxu0
    %v241 = vadd.f32 0.0, %v240
    %v242 = vpop.f32.mrb[0].mxu0
    %243 = vmatprep.mubr.f32.mxu0 0.0
    %244 = vmatmul.mubr.f32.gmra.mrb[0].mxu0 %v159
    %v245 = vpop.f32.mrb[0].mxu0
    %v246 = vadd.f32 0.0, %v245
    %v247 = vpop.f32.mrb[0].mxu0
    %248 = vdwg.mxu0
    %v249 = vld [vmem:[%s5] sm:$0xff]
    %v250 = vld [vmem:[%s5 + $0x8] sm:$0xff]
    %v251 = vld [vmem:[%s5 + $0x10] sm:$0xff]
    %v252 = vld [vmem:[%s5 + $0x18] sm:$0xff]
    %v253 = vld [vmem:[%s5 + $0x20] sm:$0xff]
    %v254 = vld [vmem:[%s5 + $0x28] sm:$0xff]
    %v255 = vld [vmem:[%s5 + $0x30] sm:$0xff]
    %v256 = vld [vmem:[%s5 + $0x38] sm:$0xff]
    %v257 = vld [vmem:[%s6] sm:$0xff]
    %v258 = vld [vmem:[%s6 + $0x8] sm:$0xff]
    %v259 = vld [vmem:[%s6 + $0x10] sm:$0xff]
    %v260 = vld [vmem:[%s6 + $0x18] sm:$0xff]
    %v261 = vld [vmem:[%s6 + $0x20] sm:$0xff]
    %v262 = vld [vmem:[%s6 + $0x28] sm:$0xff]
    %v263 = vld [vmem:[%s6 + $0x30] sm:$0xff]
    %v264 = vld [vmem:[%s6 + $0x38] sm:$0xff]
    %v266 = vsel %vm148, %v125, 0
    %v269 = vsel %vm148, %v130, 0
    %v272 = vsel %vm148, %v135, 0
    %v275 = vsel %vm148, %v140, 0
    %v278 = vsel %vm148, %v231, 0
    %v281 = vsel %vm148, %v236, 0
    %v284 = vsel %vm148, %v241, 0
    %v287 = vsel %vm148, %v246, 0
    %289 = vmatprep.subr.mxu0 0.0
    %290 = vmatpush1.msra.mxu0 1.0
    %291 = vmatprep.subr.mxu0 0.0
    %292 = vmatpush1.msra.mxu0 0.0
    %293 = vmatprep.subr.mxu0 0.0
    %294 = vmatpush1.msra.mxu0 0.0
    %295 = vmatprep.subr.mxu0 0.0
    %296 = vmatpush1.msra.mxu0 0.0
    %297 = vmatprep.subr.mxu0 0.0
    %298 = vmatpush1.msra.mxu0 0.0
    %299 = vmatprep.subr.mxu0 0.0
    %300 = vmatpush1.msra.mxu0 0.0
    %301 = vmatprep.subr.mxu0 0.0
    %302 = vmatpush1.msra.mxu0 0.0
    %303 = vmatprep.subr.mxu0 0.0
    %304 = vmatpush1.msra.mxu0 0.0
    %305 = vmatprep.subr.mxu0 0.0
    %306 = vmatpush1.msra.mxu0 0.0
    %307 = vmatprep.subr.mxu0 0.0
    %308 = vmatpush1.msra.mxu0 0.0
    %309 = vmatprep.subr.mxu0 0.0
    %310 = vmatpush1.msra.mxu0 0.0
    %311 = vmatprep.subr.mxu0 0.0
    %312 = vmatpush1.msra.mxu0 0.0
    %313 = vmatprep.subr.mxu0 0.0
    %314 = vmatpush1.msra.mxu0 0.0
    %315 = vmatprep.subr.mxu0 0.0
    %316 = vmatpush1.msra.mxu0 0.0
    %317 = vmatprep.subr.mxu0 0.0
    %318 = vmatpush1.msra.mxu0 0.0
    %319 = vmatprep.subr.mxu0 0.0
    %320 = vmatpush1.msra.mxu0 0.0
    %321 = vmatprep.subr.mxu0 0.0
    %322 = vmatpush1.msra.mxu0 0.0
    %323 = vmatprep.subr.mxu0 0.0
    %324 = vmatpush1.msra.mxu0 0.0
    %325 = vmatprep.subr.mxu0 0.0
    %326 = vmatpush1.msra.mxu0 0.0
    %327 = vmatprep.subr.mxu0 0.0
    %328 = vmatpush1.msra.mxu0 0.0
    %329 = vmatprep.subr.mxu0 0.0
    %330 = vmatpush1.msra.mxu0 0.0
    %331 = vmatprep.subr.mxu0 0.0
    %332 = vmatpush1.msra.mxu0 0.0
    %333 = vmatprep.subr.mxu0 0.0
    %334 = vmatpush1.msra.mxu0 0.0
    %335 = vmatprep.subr.mxu0 0.0
    %336 = vmatpush1.msra.mxu0 0.0
    %337 = vmatprep.subr.mxu0 0.0
    %338 = vmatpush1.msra.mxu0 0.0
    %339 = vmatprep.subr.mxu0 0.0
    %340 = vmatpush1.msra.mxu0 0.0
    %341 = vmatprep.subr.mxu0 0.0
    %342 = vmatpush1.msra.mxu0 0.0
    %343 = vmatprep.subr.mxu0 0.0
    %344 = vmatpush1.msra.mxu0 0.0
    %345 = vmatprep.subr.mxu0 0.0
    %346 = vmatpush1.msra.mxu0 0.0
    %347 = vmatprep.subr.mxu0 0.0
    %348 = vmatpush1.msra.mxu0 0.0
    %349 = vmatprep.subr.mxu0 0.0
    %350 = vmatpush1.msra.mxu0 0.0
    %351 = vmatprep.subr.mxu0 0.0
    %352 = vmatpush1.msra.mxu0 0.0
    %353 = vmatprep.mubr.f32.mxu0 0.0
    %354 = vmatmul.mubr.f32.gmra.mrb[0].mxu0 %v266
    %v355 = vpop.f32.mrb[0].mxu0
    %v356 = vadd.f32 0.0, %v355
    %v357 = vpop.f32.mrb[0].mxu0
    %358 = vmatprep.mubr.f32.mxu0 0.0
    %359 = vmatmul.mubr.f32.gmra.mrb[0].mxu0 %v269
    %v360 = vpop.f32.mrb[0].mxu0
    %v361 = vadd.f32 0.0, %v360
    %v362 = vpop.f32.mrb[0].mxu0
    %363 = vmatprep.mubr.f32.mxu0 0.0
    %364 = vmatmul.mubr.f32.gmra.mrb[0].mxu0 %v272
    %v365 = vpop.f32.mrb[0].mxu0
    %v366 = vadd.f32 0.0, %v365
    %v367 = vpop.f32.mrb[0].mxu0
    %368 = vmatprep.mubr.f32.mxu0 0.0
    %369 = vmatmul.mubr.f32.gmra.mrb[0].mxu0 %v275
    %v370 = vpop.f32.mrb[0].mxu0
    %v371 = vadd.f32 0.0, %v370
    %v372 = vpop.f32.mrb[0].mxu0
    %373 = vmatprep.mubr.f32.mxu0 0.0
    %374 = vmatmul.mubr.f32.gmra.mrb[0].mxu0 %v278
    %v375 = vpop.f32.mrb[0].mxu0
    %v376 = vadd.f32 0.0, %v375
    %v377 = vpop.f32.mrb[0].mxu0
    %378 = vmatprep.mubr.f32.mxu0 0.0
    %379 = vmatmul.mubr.f32.gmra.mrb[0].mxu0 %v281
    %v380 = vpop.f32.mrb[0].mxu0
    %v381 = vadd.f32 0.0, %v380
    %v382 = vpop.f32.mrb[0].mxu0
    %383 = vmatprep.mubr.f32.mxu0 0.0
    %384 = vmatmul.mubr.f32.gmra.mrb[0].mxu0 %v284
    %v385 = vpop.f32.mrb[0].mxu0
    %v386 = vadd.f32 0.0, %v385
    %v387 = vpop.f32.mrb[0].mxu0
    %388 = vmatprep.mubr.f32.mxu0 0.0
    %389 = vmatmul.mubr.f32.gmra.mrb[0].mxu0 %v287
    %v390 = vpop.f32.mrb[0].mxu0
    %v391 = vadd.f32 0.0, %v390
    %v392 = vpop.f32.mrb[0].mxu0
    %393 = vdwg.mxu0
    %v394 = vmul.f32 %v356, 0.125
    %v395 = vmul.f32 %v361, 0.125
    %v396 = vmul.f32 %v366, 0.125
    %v397 = vmul.f32 %v371, 0.125
    %v398 = vmul.f32 %v376, 0.125
    %v399 = vmul.f32 %v381, 0.125
    %v400 = vmul.f32 %v386, 0.125
    %v401 = vmul.f32 %v391, 0.125
    %403 = vset.pattern.permute.xlu0 0
    %404 = vperm.xlu0 %403, %v394
    %v405 = vpop.permute.xlu0 %404
    %408 = vset.pattern.permute.xlu0 0
    %409 = vperm.xlu0 %408, %v395
    %v410 = vpop.permute.xlu0 %409
    %413 = vset.pattern.permute.xlu0 0
    %414 = vperm.xlu0 %413, %v396
    %v415 = vpop.permute.xlu0 %414
    %418 = vset.pattern.permute.xlu0 0
    %419 = vperm.xlu0 %418, %v397
    %v420 = vpop.permute.xlu0 %419
    %423 = vset.pattern.permute.xlu0 0
    %424 = vperm.xlu0 %423, %v398
    %v425 = vpop.permute.xlu0 %424
    %428 = vset.pattern.permute.xlu0 0
    %429 = vperm.xlu0 %428, %v399
    %v430 = vpop.permute.xlu0 %429
    %433 = vset.pattern.permute.xlu0 0
    %434 = vperm.xlu0 %433, %v400
    %v435 = vpop.permute.xlu0 %434
    %438 = vset.pattern.permute.xlu0 0
    %439 = vperm.xlu0 %438, %v401
    %v440 = vpop.permute.xlu0 %439
    %v442 = vsub.f32 %v125, %v405
    %v443 = vsub.f32 %v130, %v410
    %v444 = vsub.f32 %v135, %v415
    %v445 = vsub.f32 %v140, %v420
    %v446 = vsub.f32 %v231, %v425
    %v447 = vsub.f32 %v236, %v430
    %v448 = vsub.f32 %v241, %v435
    %v449 = vsub.f32 %v246, %v440
    %v450 = vmul.f32 %v442, %v442
    %v451 = vmul.f32 %v443, %v443
    %v452 = vmul.f32 %v444, %v444
    %v453 = vmul.f32 %v445, %v445
    %v454 = vmul.f32 %v446, %v446
    %v455 = vmul.f32 %v447, %v447
    %v456 = vmul.f32 %v448, %v448
    %v457 = vmul.f32 %v449, %v449
    %v459 = vsel %vm148, %v450, 0
    %v462 = vsel %vm148, %v451, 0
    %v465 = vsel %vm148, %v452, 0
    %v468 = vsel %vm148, %v453, 0
    %v471 = vsel %vm148, %v454, 0
    %v474 = vsel %vm148, %v455, 0
    %v477 = vsel %vm148, %v456, 0
    %v480 = vsel %vm148, %v457, 0
    %482 = vmatprep.subr.mxu0 0.0
    %483 = vmatpush1.msra.mxu0 1.0
    %484 = vmatprep.subr.mxu0 0.0
    %485 = vmatpush1.msra.mxu0 0.0
    %486 = vmatprep.subr.mxu0 0.0
    %487 = vmatpush1.msra.mxu0 0.0
    %488 = vmatprep.subr.mxu0 0.0
    %489 = vmatpush1.msra.mxu0 0.0
    %490 = vmatprep.subr.mxu0 0.0
    %491 = vmatpush1.msra.mxu0 0.0
    %492 = vmatprep.subr.mxu0 0.0
    %493 = vmatpush1.msra.mxu0 0.0
    %494 = vmatprep.subr.mxu0 0.0
    %495 = vmatpush1.msra.mxu0 0.0
    %496 = vmatprep.subr.mxu0 0.0
    %497 = vmatpush1.msra.mxu0 0.0
    %498 = vmatprep.subr.mxu0 0.0
    %499 = vmatpush1.msra.mxu0 0.0
    %500 = vmatprep.subr.mxu0 0.0
    %501 = vmatpush1.msra.mxu0 0.0
    %502 = vmatprep.subr.mxu0 0.0
    %503 = vmatpush1.msra.mxu0 0.0
    %504 = vmatprep.subr.mxu0 0.0
    %505 = vmatpush1.msra.mxu0 0.0
    %506 = vmatprep.subr.mxu0 0.0
    %507 = vmatpush1.msra.mxu0 0.0
    %508 = vmatprep.subr.mxu0 0.0
    %509 = vmatpush1.msra.mxu0 0.0
    %510 = vmatprep.subr.mxu0 0.0
    %511 = vmatpush1.msra.mxu0 0.0
    %512 = vmatprep.subr.mxu0 0.0
    %513 = vmatpush1.msra.mxu0 0.0
    %514 = vmatprep.subr.mxu0 0.0
    %515 = vmatpush1.msra.mxu0 0.0
    %516 = vmatprep.subr.mxu0 0.0
    %517 = vmatpush1.msra.mxu0 0.0
    %518 = vmatprep.subr.mxu0 0.0
    %519 = vmatpush1.msra.mxu0 0.0
    %520 = vmatprep.subr.mxu0 0.0
    %521 = vmatpush1.msra.mxu0 0.0
    %522 = vmatprep.subr.mxu0 0.0
    %523 = vmatpush1.msra.mxu0 0.0
    %524 = vmatprep.subr.mxu0 0.0
    %525 = vmatpush1.msra.mxu0 0.0
    %526 = vmatprep.subr.mxu0 0.0
    %527 = vmatpush1.msra.mxu0 0.0
    %528 = vmatprep.subr.mxu0 0.0
    %529 = vmatpush1.msra.mxu0 0.0
    %530 = vmatprep.subr.mxu0 0.0
    %531 = vmatpush1.msra.mxu0 0.0
    %532 = vmatprep.subr.mxu0 0.0
    %533 = vmatpush1.msra.mxu0 0.0
    %534 = vmatprep.subr.mxu0 0.0
    %535 = vmatpush1.msra.mxu0 0.0
    %536 = vmatprep.subr.mxu0 0.0
    %537 = vmatpush1.msra.mxu0 0.0
    %538 = vmatprep.subr.mxu0 0.0
    %539 = vmatpush1.msra.mxu0 0.0
    %540 = vmatprep.subr.mxu0 0.0
    %541 = vmatpush1.msra.mxu0 0.0
    %542 = vmatprep.subr.mxu0 0.0
    %543 = vmatpush1.msra.mxu0 0.0
    %544 = vmatprep.subr.mxu0 0.0
    %545 = vmatpush1.msra.mxu0 0.0
    %546 = vmatprep.mubr.f32.mxu0 0.0
    %547 = vmatmul.mubr.f32.gmra.mrb[0].mxu0 %v459
    %v548 = vpop.f32.mrb[0].mxu0
    %v549 = vadd.f32 0.0, %v548
    %v550 = vpop.f32.mrb[0].mxu0
    %551 = vmatprep.mubr.f32.mxu0 0.0
    %552 = vmatmul.mubr.f32.gmra.mrb[0].mxu0 %v462
    %v553 = vpop.f32.mrb[0].mxu0
    %v554 = vadd.f32 0.0, %v553
    %v555 = vpop.f32.mrb[0].mxu0
    %556 = vmatprep.mubr.f32.mxu0 0.0
    %557 = vmatmul.mubr.f32.gmra.mrb[0].mxu0 %v465
    %v558 = vpop.f32.mrb[0].mxu0
    %v559 = vadd.f32 0.0, %v558
    %v560 = vpop.f32.mrb[0].mxu0
    %561 = vmatprep.mubr.f32.mxu0 0.0
    %562 = vmatmul.mubr.f32.gmra.mrb[0].mxu0 %v468
    %v563 = vpop.f32.mrb[0].mxu0
    %v564 = vadd.f32 0.0, %v563
    %v565 = vpop.f32.mrb[0].mxu0
    %566 = vmatprep.mubr.f32.mxu0 0.0
    %567 = vmatmul.mubr.f32.gmra.mrb[0].mxu0 %v471
    %v568 = vpop.f32.mrb[0].mxu0
    %v569 = vadd.f32 0.0, %v568
    %v570 = vpop.f32.mrb[0].mxu0
    %571 = vmatprep.mubr.f32.mxu0 0.0
    %572 = vmatmul.mubr.f32.gmra.mrb[0].mxu0 %v474
    %v573 = vpop.f32.mrb[0].mxu0
    %v574 = vadd.f32 0.0, %v573
    %v575 = vpop.f32.mrb[0].mxu0
    %576 = vmatprep.mubr.f32.mxu0 0.0
    %577 = vmatmul.mubr.f32.gmra.mrb[0].mxu0 %v477
    %v578 = vpop.f32.mrb[0].mxu0
    %v579 = vadd.f32 0.0, %v578
    %v580 = vpop.f32.mrb[0].mxu0
    %581 = vmatprep.mubr.f32.mxu0 0.0
    %582 = vmatmul.mubr.f32.gmra.mrb[0].mxu0 %v480
    %v583 = vpop.f32.mrb[0].mxu0
    %v584 = vadd.f32 0.0, %v583
    %v585 = vpop.f32.mrb[0].mxu0
    %586 = vdwg.mxu0
    %v587 = vmul.f32 %v549, 0.125
    %v588 = vmul.f32 %v554, 0.125
    %v589 = vmul.f32 %v559, 0.125
    %v590 = vmul.f32 %v564, 0.125
    %v591 = vmul.f32 %v569, 0.125
    %v592 = vmul.f32 %v574, 0.125
    %v593 = vmul.f32 %v579, 0.125
    %v594 = vmul.f32 %v584, 0.125
    %v595 = vadd.f32 %v587, 1e-05
    %v596 = vadd.f32 %v588, 1e-05
    %v597 = vadd.f32 %v589, 1e-05
    %v598 = vadd.f32 %v590, 1e-05
    %v599 = vadd.f32 %v591, 1e-05
    %v600 = vadd.f32 %v592, 1e-05
    %v601 = vadd.f32 %v593, 1e-05
    %v602 = vadd.f32 %v594, 1e-05
    %v603 = vrsqrt.pop %v595
    %v604 = vrsqrt.pop %v596
    %v605 = vrsqrt.pop %v597
    %v606 = vrsqrt.pop %v598
    %v607 = vrsqrt.pop %v599
    %v608 = vrsqrt.pop %v600
    %v609 = vrsqrt.pop %v601
    %v610 = vrsqrt.pop %v602
    %v611 = vmul.f32 %v249, %v603
    %v612 = vmul.f32 %v250, %v604
    %v613 = vmul.f32 %v251, %v605
    %v614 = vmul.f32 %v252, %v606
    %v615 = vmul.f32 %v253, %v607
    %v616 = vmul.f32 %v254, %v608
    %v617 = vmul.f32 %v255, %v609
    %v618 = vmul.f32 %v256, %v610
    %620 = vset.pattern.permute.xlu0 0
    %621 = vperm.xlu0 %620, %v611
    %v622 = vpop.permute.xlu0 %621
    %625 = vset.pattern.permute.xlu0 0
    %626 = vperm.xlu0 %625, %v612
    %v627 = vpop.permute.xlu0 %626
    %630 = vset.pattern.permute.xlu0 0
    %631 = vperm.xlu0 %630, %v613
    %v632 = vpop.permute.xlu0 %631
    %635 = vset.pattern.permute.xlu0 0
    %636 = vperm.xlu0 %635, %v614
    %v637 = vpop.permute.xlu0 %636
    %640 = vset.pattern.permute.xlu0 0
    %641 = vperm.xlu0 %640, %v615
    %v642 = vpop.permute.xlu0 %641
    %645 = vset.pattern.permute.xlu0 0
    %646 = vperm.xlu0 %645, %v616
    %v647 = vpop.permute.xlu0 %646
    %650 = vset.pattern.permute.xlu0 0
    %651 = vperm.xlu0 %650, %v617
    %v652 = vpop.permute.xlu0 %651
    %655 = vset.pattern.permute.xlu0 0
    %656 = vperm.xlu0 %655, %v618
    %v657 = vpop.permute.xlu0 %656
    %v659 = vmul.f32 %v442, %v622
    %v660 = vmul.f32 %v443, %v627
    %v661 = vmul.f32 %v444, %v632
    %v662 = vmul.f32 %v445, %v637
    %v663 = vmul.f32 %v446, %v642
    %v664 = vmul.f32 %v447, %v647
    %v665 = vmul.f32 %v448, %v652
    %v666 = vmul.f32 %v449, %v657
    %668 = vset.pattern.permute.xlu0 0
    %669 = vperm.xlu0 %668, %v257
    %v670 = vpop.permute.xlu0 %669
    %673 = vset.pattern.permute.xlu0 0
    %674 = vperm.xlu0 %673, %v258
    %v675 = vpop.permute.xlu0 %674
    %678 = vset.pattern.permute.xlu0 0
    %679 = vperm.xlu0 %678, %v259
    %v680 = vpop.permute.xlu0 %679
    %683 = vset.pattern.permute.xlu0 0
    %684 = vperm.xlu0 %683, %v260
    %v685 = vpop.permute.xlu0 %684
    %688 = vset.pattern.permute.xlu0 0
    %689 = vperm.xlu0 %688, %v261
    %v690 = vpop.permute.xlu0 %689
    %693 = vset.pattern.permute.xlu0 0
    %694 = vperm.xlu0 %693, %v262
    %v695 = vpop.permute.xlu0 %694
    %698 = vset.pattern.permute.xlu0 0
    %699 = vperm.xlu0 %698, %v263
    %v700 = vpop.permute.xlu0 %699
    %703 = vset.pattern.permute.xlu0 0
    %704 = vperm.xlu0 %703, %v264
    %v705 = vpop.permute.xlu0 %704
    %v707 = vadd.f32 %v659, %v670
    %v708 = vadd.f32 %v660, %v675
    %v709 = vadd.f32 %v661, %v680
    %v710 = vadd.f32 %v662, %v685
    %v711 = vadd.f32 %v663, %v690
    %v712 = vadd.f32 %v664, %v695
    %v713 = vadd.f32 %v665, %v700
    %v714 = vadd.f32 %v666, %v705
    %v715 = vmax.f32 %v707, 0.0
    %v716 = vmax.f32 %v708, 0.0
    %v717 = vmax.f32 %v709, 0.0
    %v718 = vmax.f32 %v710, 0.0
    %v719 = vmax.f32 %v711, 0.0
    %v720 = vmax.f32 %v712, 0.0
    %v721 = vmax.f32 %v713, 0.0
    %v722 = vmax.f32 %v714, 0.0
    %v723 = vld [vmem:[%s4] sm:$0xff]
    %v724 = vld [vmem:[%s4 + $0x8] sm:$0xff]
    %v725 = vld [vmem:[%s4 + $0x10] sm:$0xff]
    %v726 = vld [vmem:[%s4 + $0x18] sm:$0xff]
    %v727 = vld [vmem:[%s4 + $0x20] sm:$0xff]
    %v728 = vld [vmem:[%s4 + $0x28] sm:$0xff]
    %v729 = vld [vmem:[%s4 + $0x30] sm:$0xff]
    %v730 = vld [vmem:[%s4 + $0x38] sm:$0xff]
    %vm731 = vcmask 523264
    %v733 = vsel %vm731, %v723, 0
    %v736 = vsel %vm731, %v724, 0
    %v739 = vsel %vm731, %v725, 0
    %v742 = vsel %vm731, %v726, 0
    %v745 = vsel %vm731, %v727, 0
    %v748 = vsel %vm731, %v728, 0
    %v751 = vsel %vm731, %v729, 0
    %v754 = vsel %vm731, %v730, 0
    %756 = vmatprep.subr.mxu0 0.0
    %757 = vmatpush1.msra.mxu0 %v715
    %758 = vmatprep.subr.mxu0 0.0
    %759 = vmatpush1.msra.mxu0 %v716
    %760 = vmatprep.subr.mxu0 0.0
    %761 = vmatpush1.msra.mxu0 %v717
    %762 = vmatprep.subr.mxu0 0.0
    %763 = vmatpush1.msra.mxu0 %v718
    %764 = vmatprep.subr.mxu0 0.0
    %765 = vmatpush1.msra.mxu0 %v719
    %766 = vmatprep.subr.mxu0 0.0
    %767 = vmatpush1.msra.mxu0 %v720
    %768 = vmatprep.subr.mxu0 0.0
    %769 = vmatpush1.msra.mxu0 %v721
    %770 = vmatprep.subr.mxu0 0.0
    %771 = vmatpush1.msra.mxu0 %v722
    %772 = vmatprep.subr.mxu0 0.0
    %773 = vmatpush1.msra.mxu0 0.0
    %774 = vmatprep.subr.mxu0 0.0
    %775 = vmatpush1.msra.mxu0 0.0
    %776 = vmatprep.subr.mxu0 0.0
    %777 = vmatpush1.msra.mxu0 0.0
    %778 = vmatprep.subr.mxu0 0.0
    %779 = vmatpush1.msra.mxu0 0.0
    %780 = vmatprep.subr.mxu0 0.0
    %781 = vmatpush1.msra.mxu0 0.0
    %782 = vmatprep.subr.mxu0 0.0
    %783 = vmatpush1.msra.mxu0 0.0
    %784 = vmatprep.subr.mxu0 0.0
    %785 = vmatpush1.msra.mxu0 0.0
    %786 = vmatprep.subr.mxu0 0.0
    %787 = vmatpush1.msra.mxu0 0.0
    %788 = vmatprep.subr.mxu0 0.0
    %789 = vmatpush1.msra.mxu0 0.0
    %790 = vmatprep.subr.mxu0 0.0
    %791 = vmatpush1.msra.mxu0 0.0
    %792 = vmatprep.subr.mxu0 0.0
    %793 = vmatpush1.msra.mxu0 0.0
    %794 = vmatprep.subr.mxu0 0.0
    %795 = vmatpush1.msra.mxu0 0.0
    %796 = vmatprep.subr.mxu0 0.0
    %797 = vmatpush1.msra.mxu0 0.0
    %798 = vmatprep.subr.mxu0 0.0
    %799 = vmatpush1.msra.mxu0 0.0
    %800 = vmatprep.subr.mxu0 0.0
    %801 = vmatpush1.msra.mxu0 0.0
    %802 = vmatprep.subr.mxu0 0.0
    %803 = vmatpush1.msra.mxu0 0.0
    %804 = vmatprep.subr.mxu0 0.0
    %805 = vmatpush1.msra.mxu0 0.0
    %806 = vmatprep.subr.mxu0 0.0
    %807 = vmatpush1.msra.mxu0 0.0
    %808 = vmatprep.subr.mxu0 0.0
    %809 = vmatpush1.msra.mxu0 0.0
    %810 = vmatprep.subr.mxu0 0.0
    %811 = vmatpush1.msra.mxu0 0.0
    %812 = vmatprep.subr.mxu0 0.0
    %813 = vmatpush1.msra.mxu0 0.0
    %814 = vmatprep.subr.mxu0 0.0
    %815 = vmatpush1.msra.mxu0 0.0
    %816 = vmatprep.subr.mxu0 0.0
    %817 = vmatpush1.msra.mxu0 0.0
    %818 = vmatprep.subr.mxu0 0.0
    %819 = vmatpush1.msra.mxu0 0.0
    %820 = vmatprep.mubr.f32.mxu0 0.0
    %821 = vmatmul.mubr.f32.gmra.mrb[0].mxu0 %v733
    %v822 = vpop.f32.mrb[0].mxu0
    %v823 = vadd.f32 0.0, %v822
    %v824 = vpop.f32.mrb[0].mxu0
    %825 = vmatprep.mubr.f32.mxu0 0.0
    %826 = vmatmul.mubr.f32.gmra.mrb[0].mxu0 %v736
    %v827 = vpop.f32.mrb[0].mxu0
    %v828 = vadd.f32 0.0, %v827
    %v829 = vpop.f32.mrb[0].mxu0
    %830 = vmatprep.mubr.f32.mxu0 0.0
    %831 = vmatmul.mubr.f32.gmra.mrb[0].mxu0 %v739
    %v832 = vpop.f32.mrb[0].mxu0
    %v833 = vadd.f32 0.0, %v832
    %v834 = vpop.f32.mrb[0].mxu0
    %835 = vmatprep.mubr.f32.mxu0 0.0
    %836 = vmatmul.mubr.f32.gmra.mrb[0].mxu0 %v742
    %v837 = vpop.f32.mrb[0].mxu0
    %v838 = vadd.f32 0.0, %v837
    %v839 = vpop.f32.mrb[0].mxu0
    %840 = vmatprep.mubr.f32.mxu0 0.0
    %841 = vmatmul.mubr.f32.gmra.mrb[0].mxu0 %v745
    %v842 = vpop.f32.mrb[0].mxu0
    %v843 = vadd.f32 0.0, %v842
    %v844 = vpop.f32.mrb[0].mxu0
    %845 = vmatprep.mubr.f32.mxu0 0.0
    %846 = vmatmul.mubr.f32.gmra.mrb[0].mxu0 %v748
    %v847 = vpop.f32.mrb[0].mxu0
    %v848 = vadd.f32 0.0, %v847
    %v849 = vpop.f32.mrb[0].mxu0
    %850 = vmatprep.mubr.f32.mxu0 0.0
    %851 = vmatmul.mubr.f32.gmra.mrb[0].mxu0 %v751
    %v852 = vpop.f32.mrb[0].mxu0
    %v853 = vadd.f32 0.0, %v852
    %v854 = vpop.f32.mrb[0].mxu0
    %855 = vmatprep.mubr.f32.mxu0 0.0
    %856 = vmatmul.mubr.f32.gmra.mrb[0].mxu0 %v754
    %v857 = vpop.f32.mrb[0].mxu0
    %v858 = vadd.f32 0.0, %v857
    %v859 = vpop.f32.mrb[0].mxu0
    %860 = vdwg.mxu0
    %v861 = vld [vmem:[%s7] sm:$0xff]
    %v862 = vld [vmem:[%s7 + $0x8] sm:$0xff]
    %v863 = vld [vmem:[%s7 + $0x10] sm:$0xff]
    %v864 = vld [vmem:[%s7 + $0x18] sm:$0xff]
    %v865 = vld [vmem:[%s7 + $0x20] sm:$0xff]
    %v866 = vld [vmem:[%s7 + $0x28] sm:$0xff]
    %v867 = vld [vmem:[%s7 + $0x30] sm:$0xff]
    %v868 = vld [vmem:[%s7 + $0x38] sm:$0xff]
    %v869 = vld [vmem:[%s8] sm:$0xff]
    %v870 = vld [vmem:[%s8 + $0x8] sm:$0xff]
    %v871 = vld [vmem:[%s8 + $0x10] sm:$0xff]
    %v872 = vld [vmem:[%s8 + $0x18] sm:$0xff]
    %v873 = vld [vmem:[%s8 + $0x20] sm:$0xff]
    %v874 = vld [vmem:[%s8 + $0x28] sm:$0xff]
    %v875 = vld [vmem:[%s8 + $0x30] sm:$0xff]
    %v876 = vld [vmem:[%s8 + $0x38] sm:$0xff]
    %v878 = vsel %vm148, %v823, 0
    %v881 = vsel %vm148, %v828, 0
    %v884 = vsel %vm148, %v833, 0
    %v887 = vsel %vm148, %v838, 0
    %v890 = vsel %vm148, %v843, 0
    %v893 = vsel %vm148, %v848, 0
    %v896 = vsel %vm148, %v853, 0
    %v899 = vsel %vm148, %v858, 0
    %901 = vmatprep.subr.mxu0 0.0
    %902 = vmatpush1.msra.mxu0 1.0
    %903 = vmatprep.subr.mxu0 0.0
    %904 = vmatpush1.msra.mxu0 0.0
    %905 = vmatprep.subr.mxu0 0.0
    %906 = vmatpush1.msra.mxu0 0.0
    %907 = vmatprep.subr.mxu0 0.0
    %908 = vmatpush1.msra.mxu0 0.0
    %909 = vmatprep.subr.mxu0 0.0
    %910 = vmatpush1.msra.mxu0 0.0
    %911 = vmatprep.subr.mxu0 0.0
    %912 = vmatpush1.msra.mxu0 0.0
    %913 = vmatprep.subr.mxu0 0.0
    %914 = vmatpush1.msra.mxu0 0.0
    %915 = vmatprep.subr.mxu0 0.0
    %916 = vmatpush1.msra.mxu0 0.0
    %917 = vmatprep.subr.mxu0 0.0
    %918 = vmatpush1.msra.mxu0 0.0
    %919 = vmatprep.subr.mxu0 0.0
    %920 = vmatpush1.msra.mxu0 0.0
    %921 = vmatprep.subr.mxu0 0.0
    %922 = vmatpush1.msra.mxu0 0.0
    %923 = vmatprep.subr.mxu0 0.0
    %924 = vmatpush1.msra.mxu0 0.0
    %925 = vmatprep.subr.mxu0 0.0
    %926 = vmatpush1.msra.mxu0 0.0
    %927 = vmatprep.subr.mxu0 0.0
    %928 = vmatpush1.msra.mxu0 0.0
    %929 = vmatprep.subr.mxu0 0.0
    %930 = vmatpush1.msra.mxu0 0.0
    %931 = vmatprep.subr.mxu0 0.0
    %932 = vmatpush1.msra.mxu0 0.0
    %933 = vmatprep.subr.mxu0 0.0
    %934 = vmatpush1.msra.mxu0 0.0
    %935 = vmatprep.subr.mxu0 0.0
    %936 = vmatpush1.msra.mxu0 0.0
    %937 = vmatprep.subr.mxu0 0.0
    %938 = vmatpush1.msra.mxu0 0.0
    %939 = vmatprep.subr.mxu0 0.0
    %940 = vmatpush1.msra.mxu0 0.0
    %941 = vmatprep.subr.mxu0 0.0
    %942 = vmatpush1.msra.mxu0 0.0
    %943 = vmatprep.subr.mxu0 0.0
    %944 = vmatpush1.msra.mxu0 0.0
    %945 = vmatprep.subr.mxu0 0.0
    %946 = vmatpush1.msra.mxu0 0.0
    %947 = vmatprep.subr.mxu0 0.0
    %948 = vmatpush1.msra.mxu0 0.0
    %949 = vmatprep.subr.mxu0 0.0
    %950 = vmatpush1.msra.mxu0 0.0
    %951 = vmatprep.subr.mxu0 0.0
    %952 = vmatpush1.msra.mxu0 0.0
    %953 = vmatprep.subr.mxu0 0.0
    %954 = vmatpush1.msra.mxu0 0.0
    %955 = vmatprep.subr.mxu0 0.0
    %956 = vmatpush1.msra.mxu0 0.0
    %957 = vmatprep.subr.mxu0 0.0
    %958 = vmatpush1.msra.mxu0 0.0
    %959 = vmatprep.subr.mxu0 0.0
    %960 = vmatpush1.msra.mxu0 0.0
    %961 = vmatprep.subr.mxu0 0.0
    %962 = vmatpush1.msra.mxu0 0.0
    %963 = vmatprep.subr.mxu0 0.0
    %964 = vmatpush1.msra.mxu0 0.0
    %965 = vmatprep.mubr.f32.mxu0 0.0
    %966 = vmatmul.mubr.f32.gmra.mrb[0].mxu0 %v878
    %v967 = vpop.f32.mrb[0].mxu0
    %v968 = vadd.f32 0.0, %v967
    %v969 = vpop.f32.mrb[0].mxu0
    %970 = vmatprep.mubr.f32.mxu0 0.0
    %971 = vmatmul.mubr.f32.gmra.mrb[0].mxu0 %v881
    %v972 = vpop.f32.mrb[0].mxu0
    %v973 = vadd.f32 0.0, %v972
    %v974 = vpop.f32.mrb[0].mxu0
    %975 = vmatprep.mubr.f32.mxu0 0.0
    %976 = vmatmul.mubr.f32.gmra.mrb[0].mxu0 %v884
    %v977 = vpop.f32.mrb[0].mxu0
    %v978 = vadd.f32 0.0, %v977
    %v979 = vpop.f32.mrb[0].mxu0
    %980 = vmatprep.mubr.f32.mxu0 0.0
    %981 = vmatmul.mubr.f32.gmra.mrb[0].mxu0 %v887
    %v982 = vpop.f32.mrb[0].mxu0
    %v983 = vadd.f32 0.0, %v982
    %v984 = vpop.f32.mrb[0].mxu0
    %985 = vmatprep.mubr.f32.mxu0 0.0
    %986 = vmatmul.mubr.f32.gmra.mrb[0].mxu0 %v890
    %v987 = vpop.f32.mrb[0].mxu0
    %v988 = vadd.f32 0.0, %v987
    %v989 = vpop.f32.mrb[0].mxu0
    %990 = vmatprep.mubr.f32.mxu0 0.0
    %991 = vmatmul.mubr.f32.gmra.mrb[0].mxu0 %v893
    %v992 = vpop.f32.mrb[0].mxu0
    %v993 = vadd.f32 0.0, %v992
    %v994 = vpop.f32.mrb[0].mxu0
    %995 = vmatprep.mubr.f32.mxu0 0.0
    %996 = vmatmul.mubr.f32.gmra.mrb[0].mxu0 %v896
    %v997 = vpop.f32.mrb[0].mxu0
    %v998 = vadd.f32 0.0, %v997
    %v999 = vpop.f32.mrb[0].mxu0
    %1000 = vmatprep.mubr.f32.mxu0 0.0
    %1001 = vmatmul.mubr.f32.gmra.mrb[0].mxu0 %v899
    %v1002 = vpop.f32.mrb[0].mxu0
    %v1003 = vadd.f32 0.0, %v1002
    %v1004 = vpop.f32.mrb[0].mxu0
    %1005 = vdwg.mxu0
    %v1006 = vmul.f32 %v968, 0.125
    %v1007 = vmul.f32 %v973, 0.125
    %v1008 = vmul.f32 %v978, 0.125
    %v1009 = vmul.f32 %v983, 0.125
    %v1010 = vmul.f32 %v988, 0.125
    %v1011 = vmul.f32 %v993, 0.125
    %v1012 = vmul.f32 %v998, 0.125
    %v1013 = vmul.f32 %v1003, 0.125
    %1015 = vset.pattern.permute.xlu0 0
    %1016 = vperm.xlu0 %1015, %v1006
    %v1017 = vpop.permute.xlu0 %1016
    %1020 = vset.pattern.permute.xlu0 0
    %1021 = vperm.xlu0 %1020, %v1007
    %v1022 = vpop.permute.xlu0 %1021
    %1025 = vset.pattern.permute.xlu0 0
    %1026 = vperm.xlu0 %1025, %v1008
    %v1027 = vpop.permute.xlu0 %1026
    %1030 = vset.pattern.permute.xlu0 0
    %1031 = vperm.xlu0 %1030, %v1009
    %v1032 = vpop.permute.xlu0 %1031
    %1035 = vset.pattern.permute.xlu0 0
    %1036 = vperm.xlu0 %1035, %v1010
    %v1037 = vpop.permute.xlu0 %1036
    %1040 = vset.pattern.permute.xlu0 0
    %1041 = vperm.xlu0 %1040, %v1011
    %v1042 = vpop.permute.xlu0 %1041
    %1045 = vset.pattern.permute.xlu0 0
    %1046 = vperm.xlu0 %1045, %v1012
    %v1047 = vpop.permute.xlu0 %1046
    %1050 = vset.pattern.permute.xlu0 0
    %1051 = vperm.xlu0 %1050, %v1013
    %v1052 = vpop.permute.xlu0 %1051
    %v1054 = vsub.f32 %v823, %v1017
    %v1055 = vsub.f32 %v828, %v1022
    %v1056 = vsub.f32 %v833, %v1027
    %v1057 = vsub.f32 %v838, %v1032
    %v1058 = vsub.f32 %v843, %v1037
    %v1059 = vsub.f32 %v848, %v1042
    %v1060 = vsub.f32 %v853, %v1047
    %v1061 = vsub.f32 %v858, %v1052
    %v1062 = vmul.f32 %v1054, %v1054
    %v1063 = vmul.f32 %v1055, %v1055
    %v1064 = vmul.f32 %v1056, %v1056
    %v1065 = vmul.f32 %v1057, %v1057
    %v1066 = vmul.f32 %v1058, %v1058
    %v1067 = vmul.f32 %v1059, %v1059
    %v1068 = vmul.f32 %v1060, %v1060
    %v1069 = vmul.f32 %v1061, %v1061
    %v1071 = vsel %vm148, %v1062, 0
    %v1074 = vsel %vm148, %v1063, 0
    %v1077 = vsel %vm148, %v1064, 0
    %v1080 = vsel %vm148, %v1065, 0
    %v1083 = vsel %vm148, %v1066, 0
    %v1086 = vsel %vm148, %v1067, 0
    %v1089 = vsel %vm148, %v1068, 0
    %v1092 = vsel %vm148, %v1069, 0
    %1094 = vmatprep.subr.mxu0 0.0
    %1095 = vmatpush1.msra.mxu0 1.0
    %1096 = vmatprep.subr.mxu0 0.0
    %1097 = vmatpush1.msra.mxu0 0.0
    %1098 = vmatprep.subr.mxu0 0.0
    %1099 = vmatpush1.msra.mxu0 0.0
    %1100 = vmatprep.subr.mxu0 0.0
    %1101 = vmatpush1.msra.mxu0 0.0
    %1102 = vmatprep.subr.mxu0 0.0
    %1103 = vmatpush1.msra.mxu0 0.0
    %1104 = vmatprep.subr.mxu0 0.0
    %1105 = vmatpush1.msra.mxu0 0.0
    %1106 = vmatprep.subr.mxu0 0.0
    %1107 = vmatpush1.msra.mxu0 0.0
    %1108 = vmatprep.subr.mxu0 0.0
    %1109 = vmatpush1.msra.mxu0 0.0
    %1110 = vmatprep.subr.mxu0 0.0
    %1111 = vmatpush1.msra.mxu0 0.0
    %1112 = vmatprep.subr.mxu0 0.0
    %1113 = vmatpush1.msra.mxu0 0.0
    %1114 = vmatprep.subr.mxu0 0.0
    %1115 = vmatpush1.msra.mxu0 0.0
    %1116 = vmatprep.subr.mxu0 0.0
    %1117 = vmatpush1.msra.mxu0 0.0
    %1118 = vmatprep.subr.mxu0 0.0
    %1119 = vmatpush1.msra.mxu0 0.0
    %1120 = vmatprep.subr.mxu0 0.0
    %1121 = vmatpush1.msra.mxu0 0.0
    %1122 = vmatprep.subr.mxu0 0.0
    %1123 = vmatpush1.msra.mxu0 0.0
    %1124 = vmatprep.subr.mxu0 0.0
    %1125 = vmatpush1.msra.mxu0 0.0
    %1126 = vmatprep.subr.mxu0 0.0
    %1127 = vmatpush1.msra.mxu0 0.0
    %1128 = vmatprep.subr.mxu0 0.0
    %1129 = vmatpush1.msra.mxu0 0.0
    %1130 = vmatprep.subr.mxu0 0.0
    %1131 = vmatpush1.msra.mxu0 0.0
    %1132 = vmatprep.subr.mxu0 0.0
    %1133 = vmatpush1.msra.mxu0 0.0
    %1134 = vmatprep.subr.mxu0 0.0
    %1135 = vmatpush1.msra.mxu0 0.0
    %1136 = vmatprep.subr.mxu0 0.0
    %1137 = vmatpush1.msra.mxu0 0.0
    %1138 = vmatprep.subr.mxu0 0.0
    %1139 = vmatpush1.msra.mxu0 0.0
    %1140 = vmatprep.subr.mxu0 0.0
    %1141 = vmatpush1.msra.mxu0 0.0
    %1142 = vmatprep.subr.mxu0 0.0
    %1143 = vmatpush1.msra.mxu0 0.0
    %1144 = vmatprep.subr.mxu0 0.0
    %1145 = vmatpush1.msra.mxu0 0.0
    %1146 = vmatprep.subr.mxu0 0.0
    %1147 = vmatpush1.msra.mxu0 0.0
    %1148 = vmatprep.subr.mxu0 0.0
    %1149 = vmatpush1.msra.mxu0 0.0
    %1150 = vmatprep.subr.mxu0 0.0
    %1151 = vmatpush1.msra.mxu0 0.0
    %1152 = vmatprep.subr.mxu0 0.0
    %1153 = vmatpush1.msra.mxu0 0.0
    %1154 = vmatprep.subr.mxu0 0.0
    %1155 = vmatpush1.msra.mxu0 0.0
    %1156 = vmatprep.subr.mxu0 0.0
    %1157 = vmatpush1.msra.mxu0 0.0
    %1158 = vmatprep.mubr.f32.mxu0 0.0
    %1159 = vmatmul.mubr.f32.gmra.mrb[0].mxu0 %v1071
    %v1160 = vpop.f32.mrb[0].mxu0
    %v1161 = vadd.f32 0.0, %v1160
    %v1162 = vpop.f32.mrb[0].mxu0
    %1163 = vmatprep.mubr.f32.mxu0 0.0
    %1164 = vmatmul.mubr.f32.gmra.mrb[0].mxu0 %v1074
    %v1165 = vpop.f32.mrb[0].mxu0
    %v1166 = vadd.f32 0.0, %v1165
    %v1167 = vpop.f32.mrb[0].mxu0
    %1168 = vmatprep.mubr.f32.mxu0 0.0
    %1169 = vmatmul.mubr.f32.gmra.mrb[0].mxu0 %v1077
    %v1170 = vpop.f32.mrb[0].mxu0
    %v1171 = vadd.f32 0.0, %v1170
    %v1172 = vpop.f32.mrb[0].mxu0
    %1173 = vmatprep.mubr.f32.mxu0 0.0
    %1174 = vmatmul.mubr.f32.gmra.mrb[0].mxu0 %v1080
    %v1175 = vpop.f32.mrb[0].mxu0
    %v1176 = vadd.f32 0.0, %v1175
    %v1177 = vpop.f32.mrb[0].mxu0
    %1178 = vmatprep.mubr.f32.mxu0 0.0
    %1179 = vmatmul.mubr.f32.gmra.mrb[0].mxu0 %v1083
    %v1180 = vpop.f32.mrb[0].mxu0
    %v1181 = vadd.f32 0.0, %v1180
    %v1182 = vpop.f32.mrb[0].mxu0
    %1183 = vmatprep.mubr.f32.mxu0 0.0
    %1184 = vmatmul.mubr.f32.gmra.mrb[0].mxu0 %v1086
    %v1185 = vpop.f32.mrb[0].mxu0
    %v1186 = vadd.f32 0.0, %v1185
    %v1187 = vpop.f32.mrb[0].mxu0
    %1188 = vmatprep.mubr.f32.mxu0 0.0
    %1189 = vmatmul.mubr.f32.gmra.mrb[0].mxu0 %v1089
    %v1190 = vpop.f32.mrb[0].mxu0
    %v1191 = vadd.f32 0.0, %v1190
    %v1192 = vpop.f32.mrb[0].mxu0
    %1193 = vmatprep.mubr.f32.mxu0 0.0
    %1194 = vmatmul.mubr.f32.gmra.mrb[0].mxu0 %v1092
    %v1195 = vpop.f32.mrb[0].mxu0
    %v1196 = vadd.f32 0.0, %v1195
    %v1197 = vpop.f32.mrb[0].mxu0
    %1198 = vdwg.mxu0
    %v1199 = vmul.f32 %v1161, 0.125
    %v1200 = vmul.f32 %v1166, 0.125
    %v1201 = vmul.f32 %v1171, 0.125
    %v1202 = vmul.f32 %v1176, 0.125
    %v1203 = vmul.f32 %v1181, 0.125
    %v1204 = vmul.f32 %v1186, 0.125
    %v1205 = vmul.f32 %v1191, 0.125
    %v1206 = vmul.f32 %v1196, 0.125
    %v1207 = vadd.f32 %v1199, 1e-05
    %v1208 = vadd.f32 %v1200, 1e-05
    %v1209 = vadd.f32 %v1201, 1e-05
    %v1210 = vadd.f32 %v1202, 1e-05
    %v1211 = vadd.f32 %v1203, 1e-05
    %v1212 = vadd.f32 %v1204, 1e-05
    %v1213 = vadd.f32 %v1205, 1e-05
    %v1214 = vadd.f32 %v1206, 1e-05
    %v1215 = vrsqrt.pop %v1207
    %v1216 = vrsqrt.pop %v1208
    %v1217 = vrsqrt.pop %v1209
    %v1218 = vrsqrt.pop %v1210
    %v1219 = vrsqrt.pop %v1211
    %v1220 = vrsqrt.pop %v1212
    %v1221 = vrsqrt.pop %v1213
    %v1222 = vrsqrt.pop %v1214
    %v1223 = vmul.f32 %v861, %v1215
    %v1224 = vmul.f32 %v862, %v1216
    %v1225 = vmul.f32 %v863, %v1217
    %v1226 = vmul.f32 %v864, %v1218
    %v1227 = vmul.f32 %v865, %v1219
    %v1228 = vmul.f32 %v866, %v1220
    %v1229 = vmul.f32 %v867, %v1221
    %v1230 = vmul.f32 %v868, %v1222
    %1232 = vset.pattern.permute.xlu0 0
    %1233 = vperm.xlu0 %1232, %v1223
    %v1234 = vpop.permute.xlu0 %1233
    %1237 = vset.pattern.permute.xlu0 0
    %1238 = vperm.xlu0 %1237, %v1224
    %v1239 = vpop.permute.xlu0 %1238
    %1242 = vset.pattern.permute.xlu0 0
    %1243 = vperm.xlu0 %1242, %v1225
    %v1244 = vpop.permute.xlu0 %1243
    %1247 = vset.pattern.permute.xlu0 0
    %1248 = vperm.xlu0 %1247, %v1226
    %v1249 = vpop.permute.xlu0 %1248
    %1252 = vset.pattern.permute.xlu0 0
    %1253 = vperm.xlu0 %1252, %v1227
    %v1254 = vpop.permute.xlu0 %1253
    %1257 = vset.pattern.permute.xlu0 0
    %1258 = vperm.xlu0 %1257, %v1228
    %v1259 = vpop.permute.xlu0 %1258
    %1262 = vset.pattern.permute.xlu0 0
    %1263 = vperm.xlu0 %1262, %v1229
    %v1264 = vpop.permute.xlu0 %1263
    %1267 = vset.pattern.permute.xlu0 0
    %1268 = vperm.xlu0 %1267, %v1230
    %v1269 = vpop.permute.xlu0 %1268
    %v1271 = vmul.f32 %v1054, %v1234
    %v1272 = vmul.f32 %v1055, %v1239
    %v1273 = vmul.f32 %v1056, %v1244
    %v1274 = vmul.f32 %v1057, %v1249
    %v1275 = vmul.f32 %v1058, %v1254
    %v1276 = vmul.f32 %v1059, %v1259
    %v1277 = vmul.f32 %v1060, %v1264
    %v1278 = vmul.f32 %v1061, %v1269
    %1280 = vset.pattern.permute.xlu0 0
    %1281 = vperm.xlu0 %1280, %v869
    %v1282 = vpop.permute.xlu0 %1281
    %1285 = vset.pattern.permute.xlu0 0
    %1286 = vperm.xlu0 %1285, %v870
    %v1287 = vpop.permute.xlu0 %1286
    %1290 = vset.pattern.permute.xlu0 0
    %1291 = vperm.xlu0 %1290, %v871
    %v1292 = vpop.permute.xlu0 %1291
    %1295 = vset.pattern.permute.xlu0 0
    %1296 = vperm.xlu0 %1295, %v872
    %v1297 = vpop.permute.xlu0 %1296
    %1300 = vset.pattern.permute.xlu0 0
    %1301 = vperm.xlu0 %1300, %v873
    %v1302 = vpop.permute.xlu0 %1301
    %1305 = vset.pattern.permute.xlu0 0
    %1306 = vperm.xlu0 %1305, %v874
    %v1307 = vpop.permute.xlu0 %1306
    %1310 = vset.pattern.permute.xlu0 0
    %1311 = vperm.xlu0 %1310, %v875
    %v1312 = vpop.permute.xlu0 %1311
    %1315 = vset.pattern.permute.xlu0 0
    %1316 = vperm.xlu0 %1315, %v876
    %v1317 = vpop.permute.xlu0 %1316
    %v1319 = vadd.f32 %v1271, %v1282
    %v1320 = vadd.f32 %v1272, %v1287
    %v1321 = vadd.f32 %v1273, %v1292
    %v1322 = vadd.f32 %v1274, %v1297
    %v1323 = vadd.f32 %v1275, %v1302
    %v1324 = vadd.f32 %v1276, %v1307
    %v1325 = vadd.f32 %v1277, %v1312
    %v1326 = vadd.f32 %v1278, %v1317
    %v1327 = vmax.f32 %v1323, 0.0
    %v1328 = vmax.f32 %v1324, 0.0
    %v1329 = vmax.f32 %v1325, 0.0
    %v1330 = vmax.f32 %v1326, 0.0
    %v1331 = vmul.f32 %v1319, %v1327
    %v1332 = vmul.f32 %v1320, %v1328
    %v1333 = vmul.f32 %v1321, %v1329
    %v1334 = vmul.f32 %v1322, %v1330
    %s1335 = sld [smem:[#allocation2]]
    %v1336 = vstv %s1335
    %vm1337 = vcmask 261120
    %v1339 = vsel %vm1337, 1.0, 0
    %1341 = vmatprep.subr.mxu0 0.0
    %1342 = vmatpush1.msra.mxu0 %v1331
    %1343 = vmatprep.subr.mxu0 0.0
    %1344 = vmatpush1.msra.mxu0 %v1332
    %1345 = vmatprep.subr.mxu0 0.0
    %1346 = vmatpush1.msra.mxu0 %v1333
    %1347 = vmatprep.subr.mxu0 0.0
    %1348 = vmatpush1.msra.mxu0 %v1334
    %1349 = vmatprep.subr.mxu0 0.0
    %1350 = vmatpush1.msra.mxu0 0.0
    %1351 = vmatprep.subr.mxu0 0.0
    %1352 = vmatpush1.msra.mxu0 0.0
    %1353 = vmatprep.subr.mxu0 0.0
    %1354 = vmatpush1.msra.mxu0 0.0
    %1355 = vmatprep.subr.mxu0 0.0
    %1356 = vmatpush1.msra.mxu0 0.0
    %1357 = vmatprep.subr.mxu0 0.0
    %1358 = vmatpush1.msra.mxu0 0.0
    %1359 = vmatprep.subr.mxu0 0.0
    %1360 = vmatpush1.msra.mxu0 0.0
    %1361 = vmatprep.subr.mxu0 0.0
    %1362 = vmatpush1.msra.mxu0 0.0
    %1363 = vmatprep.subr.mxu0 0.0
    %1364 = vmatpush1.msra.mxu0 0.0
    %1365 = vmatprep.subr.mxu0 0.0
    %1366 = vmatpush1.msra.mxu0 0.0
    %1367 = vmatprep.subr.mxu0 0.0
    %1368 = vmatpush1.msra.mxu0 0.0
    %1369 = vmatprep.subr.mxu0 0.0
    %1370 = vmatpush1.msra.mxu0 0.0
    %1371 = vmatprep.subr.mxu0 0.0
    %1372 = vmatpush1.msra.mxu0 0.0
    %1373 = vmatprep.subr.mxu0 0.0
    %1374 = vmatpush1.msra.mxu0 0.0
    %1375 = vmatprep.subr.mxu0 0.0
    %1376 = vmatpush1.msra.mxu0 0.0
    %1377 = vmatprep.subr.mxu0 0.0
    %1378 = vmatpush1.msra.mxu0 0.0
    %1379 = vmatprep.subr.mxu0 0.0
    %1380 = vmatpush1.msra.mxu0 0.0
    %1381 = vmatprep.subr.mxu0 0.0
    %1382 = vmatpush1.msra.mxu0 0.0
    %1383 = vmatprep.subr.mxu0 0.0
    %1384 = vmatpush1.msra.mxu0 0.0
    %1385 = vmatprep.subr.mxu0 0.0
    %1386 = vmatpush1.msra.mxu0 0.0
    %1387 = vmatprep.subr.mxu0 0.0
    %1388 = vmatpush1.msra.mxu0 0.0
    %1389 = vmatprep.subr.mxu0 0.0
    %1390 = vmatpush1.msra.mxu0 0.0
    %1391 = vmatprep.subr.mxu0 0.0
    %1392 = vmatpush1.msra.mxu0 0.0
    %1393 = vmatprep.subr.mxu0 0.0
    %1394 = vmatpush1.msra.mxu0 0.0
    %1395 = vmatprep.subr.mxu0 0.0
    %1396 = vmatpush1.msra.mxu0 0.0
    %1397 = vmatprep.subr.mxu0 0.0
    %1398 = vmatpush1.msra.mxu0 0.0
    %1399 = vmatprep.subr.mxu0 0.0
    %1400 = vmatpush1.msra.mxu0 0.0
    %1401 = vmatprep.subr.mxu0 0.0
    %1402 = vmatpush1.msra.mxu0 0.0
    %1403 = vmatprep.subr.mxu0 0.0
    %1404 = vmatpush1.msra.mxu0 0.0
    %1405 = vmatprep.mubr.f32.mxu0 0.0
    %1406 = vmatmul.mubr.f32.gmra.mrb[0].mxu0 %v1339
    %v1407 = vpop.f32.mrb[0].mxu0
    %v1408 = vadd.f32 %v1336, %v1407
    %v1409 = vpop.f32.mrb[0].mxu0
    %1410 = vdwg.mxu0
    %vm1411 = vcmask 57344
    %1412 = vst.msk [vmem:[#allocation3] sm:$0x1] %vm1411, %v1408
    // Predicated region
    $region42: #{tpu_custom_call.1} parent=1 // pred_check
      _
    $region43: #{tpu_custom_call.1} parent=1 // pred_check_branch
      %1414 = sbr.rel (0) target = $region45
    $region44: #{tpu_custom_call.1} parent=1 // pred_region
      %s1416 = ssub.s32 16, 16
      %1417 = vsyncadd [#allocation4], %s1416
      %s1419 = sshll.u32 [#allocation3], 4
      %s1420 = int_to_ptr.vmem [resolvable:$true] %s1419
      %1422 = dma.vmem_to_hbm [thread:$0]  %s1420, 16, %s10, [#allocation4]
    $region45: #{tpu_custom_call.1} parent=1 // pred_fallthru
      _
    // Predicated region
    $region46: #{tpu_custom_call.1} parent=1 // pred_check
      _
    $region47: #{tpu_custom_call.1} parent=1 // pred_check_branch
      %1424 = sbr.rel (0) target = $region49
    $region48: #{tpu_custom_call.1} parent=1 // pred_region
      %1425 = dma.done [#allocation4], 16
    $region49: #{tpu_custom_call.1} parent=1 // pred_fallthru
      _
    %1426 = vsyncpa [#allocation4], 1

</llo_original>
